<compile_context>
chip_gen: v7x
topology: tpu7x:2x2x1
jax: 0.10.0
libtpu: 0.0.40
codegen_flags: <defaults>
</compile_context>

<pallas_src>
import functools

import jax
import jax.numpy as jnp
from jax.experimental import pallas as pl
from jax.experimental.pallas import tpu as pltpu

NUM_LAYERS = 3
BASE_CURVATURE = -0.2
FEEDBACK_WEIGHT = 0.3
MEMORY_INERTIA = 0.7

_LANE = 128


def _round_up(x, m):
    return ((x + m - 1) // m) * m


def _choose_block_rows(b):
    """Rows per grid step: big enough to amortize per-step overhead (~0.35us),
    small enough to give >= 2 grid steps (pipelining; megacore on v7x)."""
    if b <= 16:
        return _round_up(b, 8)                 # tiny batch: one tile
    n_steps = max(2, pl.cdiv(b, 512))          # target <= 512-row tiles
    return _round_up(pl.cdiv(b, n_steps), 16)  # multiple of 16 -> 2 streams


def _cascade_kernel(x_ref, wt_ref, b_ref, o_ref, *,
                    num_layers, feedback_weight, memory_inertia,
                    num_streams, rows_per_stream):
    # x_ref  : [TB, Fp]     activation tile (pipelined)
    # wt_ref : [L, Fp, Fp]  bf16 pre-transposed + curvature-scaled weights,
    #                       single VMEM-resident copy
    # b_ref  : [L, Fp]      f32 curvature-scaled biases, single resident copy
    # o_ref  : [TB, Fp]
    #
    # The tile is split into `num_streams` independent row streams so the MXU
    # matmul of one stream can overlap the tanh (EUP) / affine (VPU) epilogue
    # of the other.
    outs = [
        x_ref[pl.ds(s * rows_per_stream, rows_per_stream), :].astype(jnp.float32)
        for s in range(num_streams)
    ]
    for l in range(num_layers):        # static unroll: num_layers matmuls/stream
        wt = wt_ref[l]                                     # [Fp, Fp] bf16
        b = b_ref[pl.ds(l, 1), :]                          # [1, Fp]  f32
        # bf16 MXU inputs, f32 accumulation.  Curvature scale is already
        # folded into wt / b, so h is directly the tanh argument.
        hs = [
            jnp.dot(o.astype(jnp.bfloat16), wt,
                    preferred_element_type=jnp.float32) + b
            for o in outs
        ]
        # f32 epilogue; external_feedback == this layer's own input (`o`).
        outs = [
            memory_inertia * jnp.tanh(h) + feedback_weight * o
            for h, o in zip(hs, outs)
        ]
    for s in range(num_streams):
        o_ref[pl.ds(s * rows_per_stream, rows_per_stream), :] = (
            outs[s].astype(o_ref.dtype))


def prepare_cascade_params(weights, biases, *,
                           base_curvature=BASE_CURVATURE,
                           lane_multiple=_LANE):
    """One-time parameter prep (hoisted out of the forward hot path).

    weights: [L, F, F]  (PyTorch nn.Linear layout: out x in)
    biases : [L, F]
    Folds the curvature scale (1 + base_curvature) into W and b
    (tanh((xW^T + b) * c) == tanh(x(cW)^T + cb)), transposes for x @ W^T,
    zero-pads the feature dim to a lane multiple (padded lanes stay exactly
    zero through the tanh / affine cascade), and casts weights to bf16.

    Returns (wt_pad, b_pad): bf16 [L, Fp, Fp] and f32 [L, Fp].
    """
    L, f_out, f_in = weights.shape
    assert f_out == f_in, "cascade requires in_features == out_features"
    assert biases.shape == (L, f_out)
    c = 1.0 + float(base_curvature)
    fp = _round_up(f_out, lane_multiple)
    wt = jnp.transpose(weights, (0, 2, 1)) * c        # x @ wt == x @ (cW).T
    wt = jnp.pad(wt, ((0, 0), (0, fp - f_in), (0, fp - f_out)))
    b = jnp.pad(biases * c, ((0, 0), (0, fp - f_out)))
    return wt.astype(jnp.bfloat16), b.astype(jnp.float32)


def tensor_cascade_forward(x, wt_pad, b_pad, *,
                           feedback_weight=FEEDBACK_WEIGHT,
                           memory_inertia=MEMORY_INERTIA,
                           cognitive_adjustment=0.0,
                           block_rows=None):
    """Forward pass of TensorCascadeLayer (hot path; params pre-prepared).

    x: [B, F];  wt_pad: [L, Fp, Fp] bf16;  b_pad: [L, Fp] f32.
    cognitive_adjustment is stored-only in the reference module (no effect on
    the output), so it is accepted and ignored here.
    """
    del cognitive_adjustment  # stored, never used in the reference forward
    B, F = x.shape
    L, Fp, _ = wt_pad.shape
    assert Fp >= F and wt_pad.shape == (L, Fp, Fp) and b_pad.shape == (L, Fp)

    tb = _choose_block_rows(B) if block_rows is None else block_rows
    assert tb % 8 == 0
    Bp = _round_up(B, tb)
    num_streams = 2 if tb % 16 == 0 else 1
    rows_per_stream = tb // num_streams

    xp = x
    if (Bp, Fp) != (B, F):
        xp = jnp.pad(x, ((0, Bp - B), (0, Fp - F)))

    kernel = functools.partial(
        _cascade_kernel,
        num_layers=L,
        feedback_weight=float(feedback_weight),
        memory_inertia=float(memory_inertia),
        num_streams=num_streams,
        rows_per_stream=rows_per_stream,
    )

    # VMEM budget: double-buffered activation tiles + single resident
    # weight/bias copy + f32 temporaries; capped at 64 MiB so it fits v7x.
    itemsize = xp.dtype.itemsize
    vmem_bytes = (
        2 * tb * Fp * itemsize          # x tile (double-buffered)
        + 2 * tb * Fp * itemsize        # out tile (double-buffered)
        + L * Fp * Fp * 2               # bf16 weights, single copy
        + L * Fp * 4                    # f32 biases
        + 8 * tb * Fp * 4               # in-kernel f32 temporaries
    )
    vmem_limit = int(min(vmem_bytes + (4 << 20), 64 << 20))

    out = pl.pallas_call(
        kernel,
        out_shape=jax.ShapeDtypeStruct((Bp, Fp), x.dtype),
        grid_spec=pltpu.PrefetchScalarGridSpec(
            num_scalar_prefetch=0,
            grid=(Bp // tb,),
            in_specs=[
                pl.BlockSpec((tb, Fp), lambda i: (i, 0)),        # x tile
                # Grid-invariant params: untiled, single VMEM-resident copy
                # (no per-step DMA, no double buffering).
                pl.BlockSpec(memory_space=pltpu.MemorySpace.VMEM),
                pl.BlockSpec(memory_space=pltpu.MemorySpace.VMEM),
            ],
            out_specs=pl.BlockSpec((tb, Fp), lambda i: (i, 0)),
        ),
        compiler_params=pltpu.CompilerParams(
            dimension_semantics=("parallel",),
            vmem_limit_bytes=vmem_limit,
        ),
    )(xp, wt_pad, b_pad)

    if (Bp, Fp) != (B, F):
        out = out[:B, :F]
    return out


def tensor_cascade_layer(x, weights, biases, *,
                         base_curvature=BASE_CURVATURE,
                         feedback_weight=FEEDBACK_WEIGHT,
                         memory_inertia=MEMORY_INERTIA,
                         **kwargs):
    """Convenience wrapper taking raw PyTorch-layout params.

    For repeated calls, hoist prepare_cascade_params out of the hot path and
    call tensor_cascade_forward directly.
    """
    wt_pad, b_pad = prepare_cascade_params(weights, biases,
                                           base_curvature=base_curvature)
    return tensor_cascade_forward(x, wt_pad, b_pad,
                                  feedback_weight=feedback_weight,
                                  memory_inertia=memory_inertia,
                                  **kwargs)


def _reference_forward(x, weights, biases, *,
                       base_curvature=BASE_CURVATURE,
                       feedback_weight=FEEDBACK_WEIGHT,
                       memory_inertia=MEMORY_INERTIA):
    """Pure-JAX f32 reference of the assumed semantics (sanity check)."""
    out = x.astype(jnp.float32)
    for l in range(weights.shape[0]):
        h = out @ weights[l].T.astype(jnp.float32) + biases[l].astype(jnp.float32)
        field = jnp.tanh(h * (1.0 + base_curvature))
        out = memory_inertia * field + feedback_weight * out
    return out.astype(x.dtype)


if __name__ == "__main__":
    B, F = 8, 32  # batch=8, in_features=out_features=32

    key = jax.random.PRNGKey(0)
    kx, kw, kb = jax.random.split(key, 3)

    x = jax.random.normal(kx, (B, F), dtype=jnp.float32)
    # Deterministic nn.Linear-style init: uniform(-1/sqrt(F), 1/sqrt(F)).
    bound = 1.0 / jnp.sqrt(jnp.float32(F))
    weights = jax.random.uniform(kw, (NUM_LAYERS, F, F), dtype=jnp.float32,
                                 minval=-bound, maxval=bound)
    biases = jax.random.uniform(kb, (NUM_LAYERS, F), dtype=jnp.float32,
                                minval=-bound, maxval=bound)

    # One-time parameter prep (transpose + curvature fold + lane pad + bf16
    # cast), outside the hot path.
    wt_pad, b_pad = prepare_cascade_params(weights, biases)

    out = tensor_cascade_forward(x, wt_pad, b_pad)
    out = jax.block_until_ready(out)

    ref = _reference_forward(x, weights, biases)
    assert out.shape == (B, F)
    max_err = float(jnp.max(jnp.abs(out - ref)))
    # bf16 MXU inputs (f32 accumulation) -> tolerance looser than pure f32.
    assert jnp.allclose(out, ref, atol=3e-2, rtol=3e-2), (
        f"mismatch vs reference (max abs err {max_err})")

    print("KERNEL_OK")
</pallas_src>

<mosaic_0001>
module attributes {stable_mosaic.version = 11 : i64} {
  func.func @_cascade_kernel(%arg0: i32, %arg1: memref<8x128xf32, #tpu.memory_space<vmem>>, %arg2: memref<3x128x128xbf16, #tpu.memory_space<vmem>>, %arg3: memref<3x128xf32, #tpu.memory_space<vmem>>, %arg4: memref<8x128xf32, #tpu.memory_space<vmem>>) attributes {dimension_semantics = [#tpu.dimension_semantics<parallel>], iteration_bounds = array<i64: 1>, scalar_prefetch = 0 : i64, scratch_operands = 0 : i64, tpu.core_type = #tpu.core_type<tc>, window_params = [{transform_indices = @transform_0, window_bounds = array<i64: 8, 128>}, {pipeline_mode = #tpu.pipeline_mode<synchronous>, transform_indices = @transform_1, window_bounds = array<i64: 3, 128, 128>}, {pipeline_mode = #tpu.pipeline_mode<synchronous>, transform_indices = @transform_2, window_bounds = array<i64: 3, 128>}, {transform_indices = @transform_3, window_bounds = array<i64: 8, 128>}]} {
    %c0 = arith.constant 0 : index
    %c0_0 = arith.constant 0 : index
    %0 = vector.load %arg1[%c0, %c0_0] : memref<8x128xf32, #tpu.memory_space<vmem>>, vector<8x128xf32>
    %c0_1 = arith.constant 0 : index
    %c0_2 = arith.constant 0 : index
    %c0_3 = arith.constant 0 : index
    %1 = vector.load %arg2[%c0_1, %c0_2, %c0_3] : memref<3x128x128xbf16, #tpu.memory_space<vmem>>, vector<1x128x128xbf16>
    %2 = vector.shape_cast %1 : vector<1x128x128xbf16> to vector<128x128xbf16>
    %c0_4 = arith.constant 0 : index
    %c0_5 = arith.constant 0 : index
    %3 = vector.load %arg3[%c0_4, %c0_5] : memref<3x128xf32, #tpu.memory_space<vmem>>, vector<1x128xf32>
    %4 = arith.truncf %0 : vector<8x128xf32> to vector<8x128xbf16>
    %cst = arith.constant dense<0.000000e+00> : vector<8x128xf32>
    %5 = tpu.matmul %4, %2, %cst {dimension_numbers = #tpu.dot_dimension_numbers<[1], [0], [0], [1], [0, 0, 1, 1], [], []>} : vector<8x128xbf16>, vector<128x128xbf16>, vector<8x128xf32> -> vector<8x128xf32>
    %6 = vector.broadcast %3 : vector<1x128xf32> to vector<8x128xf32>
    %7 = arith.addf %5, %6 : vector<8x128xf32>
    %8 = math.tanh %7 : vector<8x128xf32>
    %cst_6 = arith.constant 0.699999988 : f32
    %9 = vector.broadcast %cst_6 : f32 to vector<8x128xf32>
    %10 = arith.mulf %9, %8 : vector<8x128xf32>
    %cst_7 = arith.constant 3.000000e-01 : f32
    %11 = vector.broadcast %cst_7 : f32 to vector<8x128xf32>
    %12 = arith.mulf %11, %0 : vector<8x128xf32>
    %13 = arith.addf %10, %12 : vector<8x128xf32>
    %c1 = arith.constant 1 : index
    %c0_8 = arith.constant 0 : index
    %c0_9 = arith.constant 0 : index
    %14 = vector.load %arg2[%c1, %c0_8, %c0_9] : memref<3x128x128xbf16, #tpu.memory_space<vmem>>, vector<1x128x128xbf16>
    %15 = vector.shape_cast %14 : vector<1x128x128xbf16> to vector<128x128xbf16>
    %c1_10 = arith.constant 1 : index
    %c0_11 = arith.constant 0 : index
    %16 = vector.load %arg3[%c1_10, %c0_11] : memref<3x128xf32, #tpu.memory_space<vmem>>, vector<1x128xf32>
    %17 = arith.truncf %13 : vector<8x128xf32> to vector<8x128xbf16>
    %cst_12 = arith.constant dense<0.000000e+00> : vector<8x128xf32>
    %18 = tpu.matmul %17, %15, %cst_12 {dimension_numbers = #tpu.dot_dimension_numbers<[1], [0], [0], [1], [0, 0, 1, 1], [], []>} : vector<8x128xbf16>, vector<128x128xbf16>, vector<8x128xf32> -> vector<8x128xf32>
    %19 = vector.broadcast %16 : vector<1x128xf32> to vector<8x128xf32>
    %20 = arith.addf %18, %19 : vector<8x128xf32>
    %21 = math.tanh %20 : vector<8x128xf32>
    %cst_13 = arith.constant 0.699999988 : f32
    %22 = vector.broadcast %cst_13 : f32 to vector<8x128xf32>
    %23 = arith.mulf %22, %21 : vector<8x128xf32>
    %cst_14 = arith.constant 3.000000e-01 : f32
    %24 = vector.broadcast %cst_14 : f32 to vector<8x128xf32>
    %25 = arith.mulf %24, %13 : vector<8x128xf32>
    %26 = arith.addf %23, %25 : vector<8x128xf32>
    %c2 = arith.constant 2 : index
    %c0_15 = arith.constant 0 : index
    %c0_16 = arith.constant 0 : index
    %27 = vector.load %arg2[%c2, %c0_15, %c0_16] : memref<3x128x128xbf16, #tpu.memory_space<vmem>>, vector<1x128x128xbf16>
    %28 = vector.shape_cast %27 : vector<1x128x128xbf16> to vector<128x128xbf16>
    %c2_17 = arith.constant 2 : index
    %c0_18 = arith.constant 0 : index
    %29 = vector.load %arg3[%c2_17, %c0_18] : memref<3x128xf32, #tpu.memory_space<vmem>>, vector<1x128xf32>
    %30 = arith.truncf %26 : vector<8x128xf32> to vector<8x128xbf16>
    %cst_19 = arith.constant dense<0.000000e+00> : vector<8x128xf32>
    %31 = tpu.matmul %30, %28, %cst_19 {dimension_numbers = #tpu.dot_dimension_numbers<[1], [0], [0], [1], [0, 0, 1, 1], [], []>} : vector<8x128xbf16>, vector<128x128xbf16>, vector<8x128xf32> -> vector<8x128xf32>
    %32 = vector.broadcast %29 : vector<1x128xf32> to vector<8x128xf32>
    %33 = arith.addf %31, %32 : vector<8x128xf32>
    %34 = math.tanh %33 : vector<8x128xf32>
    %cst_20 = arith.constant 0.699999988 : f32
    %35 = vector.broadcast %cst_20 : f32 to vector<8x128xf32>
    %36 = arith.mulf %35, %34 : vector<8x128xf32>
    %cst_21 = arith.constant 3.000000e-01 : f32
    %37 = vector.broadcast %cst_21 : f32 to vector<8x128xf32>
    %38 = arith.mulf %37, %26 : vector<8x128xf32>
    %39 = arith.addf %36, %38 : vector<8x128xf32>
    %c0_22 = arith.constant 0 : index
    %c0_23 = arith.constant 0 : index
    %40 = vector.load %arg4[%c0_22, %c0_23] : memref<8x128xf32, #tpu.memory_space<vmem>>, vector<8x128xf32>
    tpu.vector_store %arg4[%c0_22, %c0_23], %39 {strides = array<i32>} : memref<8x128xf32, #tpu.memory_space<vmem>>, vector<8x128xf32>,
    return
  }
  func.func @transform_0(%arg0: i32) -> (i32, i32) {
    %c0_i32 = arith.constant 0 : i32
    %c0_i32_0 = arith.constant 0 : i32
    return %arg0, %c0_i32 : i32, i32
  }
  func.func @transform_1(%arg0: i32) -> (i32, i32, i32) {
    %c0_i32 = arith.constant 0 : i32
    %c0_i32_0 = arith.constant 0 : i32
    %c0_i32_1 = arith.constant 0 : i32
    %c0_i32_2 = arith.constant 0 : i32
    return %c0_i32, %c0_i32_0, %c0_i32_1 : i32, i32, i32
  }
  func.func @transform_2(%arg0: i32) -> (i32, i32) {
    %c0_i32 = arith.constant 0 : i32
    %c0_i32_0 = arith.constant 0 : i32
    %c0_i32_1 = arith.constant 0 : i32
    return %c0_i32, %c0_i32_0 : i32, i32
  }
  func.func @transform_3(%arg0: i32) -> (i32, i32) {
    %c0_i32 = arith.constant 0 : i32
    %c0_i32_0 = arith.constant 0 : i32
    return %arg0, %c0_i32 : i32, i32
  }
}

</mosaic_0001>

<llo_original>
// kernel: tpu_custom_call.1
$region0: #{tpu_custom_call.1}
  #allocation0 [shape = 'u32[]', space=smem, size = 0x4, offset = 0x4, fixed_abs, tag = 'smem constant byte address 0x4 - core index']
  #allocation1 [shape = 'u32[144,128]{1,0:T(1,128)}', space=vmem, size = 0x12000, scoped, tag = 'internal scratch']
  %s0 = inlined_call_operand.hbm [shape: f32[8,128], index: 0, kind: input, shape index: {}]
  %s1 = inlined_call_operand.hbm [shape: bf16[3,128,128], index: 1, kind: input, shape index: {}]
  %s2 = inlined_call_operand.vmem [shape: f32[3,128], index: 2, kind: input, shape index: {}]
  %s3 = inlined_call_operand.hbm [shape: f32[8,128], index: 3, kind: output, shape index: {}]
  %s4 = sld [smem:[#allocation0]]
  $region30: #{tpu_custom_call.1} parent=0
    _
  %s6 = ssub.s32 1, %s4
  %s7 = scalar_select 0, %s6, %s4
  $region1: #{tpu_custom_call.1} parent=0
    #allocation2 [shape = 'u8[4096]{0}', space=vmem, size = 0x1000, scoped, tag = 'input window, operand 0, single buffered']
    #allocation3 [shape = 's32[1]{0}', space=sflag, size = 0x4, scoped, tag = 'scoped memory for tpu_custom_call.1']
    #allocation4 [shape = 's32[1]{0}', space=sflag, size = 0x4, scoped, tag = 'scoped memory for tpu_custom_call.1']
    #allocation5 [shape = 'u8[98304]{0}', space=vmem, size = 0x18000, scoped, tag = 'input window, operand 1, single buffered']
    #allocation6 [shape = 's32[1]{0}', space=sflag, size = 0x4, scoped, tag = 'scoped memory for tpu_custom_call.1']
    #allocation7 [shape = 'u8[4096]{0}', space=vmem, size = 0x1000, scoped, tag = 'output window, operand 0, single buffered']
    %8 = vsyncpa [#allocation3], 0
    %9 = vsyncpa [#allocation6], 0
    %10 = vsyncpa [#allocation4], 0
    // Predicated region
    $region2: #{tpu_custom_call.1} parent=1 // pred_check
      _
    $region3: #{tpu_custom_call.1} parent=1 // pred_check_branch
      %12 = sbr.rel (0) target = $region5
    $region4: #{tpu_custom_call.1} parent=1 // pred_region
      %s14 = ssub.s32 128, 128
      %15 = vsyncadd [#allocation3], %s14
      %s17 = sshll.u32 [#allocation2], 4
      %s18 = int_to_ptr.vmem [resolvable:$true] %s17
      %20 = dma.hbm_to_vmem [thread:$0]  %s0, 128, %s18, [#allocation3]
    $region5: #{tpu_custom_call.1} parent=1 // pred_fallthru
      _
    // Predicated region
    $region6: #{tpu_custom_call.1} parent=1 // pred_check
      _
    $region7: #{tpu_custom_call.1} parent=1 // pred_check_branch
      %22 = sbr.rel (0) target = $region9
    $region8: #{tpu_custom_call.1} parent=1 // pred_region
      %s24 = ssub.s32 3072, 3072
      %25 = vsyncadd [#allocation6], %s24
      %s26 = sshll.u32 [#allocation5], 4
      %s27 = int_to_ptr.vmem [resolvable:$true] %s26
      %32 = dma.hbm_to_vmem [thread:$0]  %s1, 3072, %s27, [#allocation6], 64, 64, 4
    $region9: #{tpu_custom_call.1} parent=1 // pred_fallthru
      _
    // Predicated region
    $region10: #{tpu_custom_call.1} parent=1 // pred_check
      _
    $region11: #{tpu_custom_call.1} parent=1 // pred_check_branch
      %34 = sbr.rel (0) target = $region13
    $region12: #{tpu_custom_call.1} parent=1 // pred_region
      _
    $region13: #{tpu_custom_call.1} parent=1 // pred_fallthru
      _
    // Predicated region
    $region14: #{tpu_custom_call.1} parent=1 // pred_check
      _
    $region15: #{tpu_custom_call.1} parent=1 // pred_check_branch
      %36 = sbr.rel (0) target = $region17
    $region16: #{tpu_custom_call.1} parent=1 // pred_region
      %37 = dma.done [#allocation3], 128
    $region17: #{tpu_custom_call.1} parent=1 // pred_fallthru
      _
    // Predicated region
    $region18: #{tpu_custom_call.1} parent=1 // pred_check
      _
    $region19: #{tpu_custom_call.1} parent=1 // pred_check_branch
      %39 = sbr.rel (0) target = $region21
    $region20: #{tpu_custom_call.1} parent=1 // pred_region
      %40 = dma.done [#allocation6], 3072
    $region21: #{tpu_custom_call.1} parent=1 // pred_fallthru
      _
    %v42 = vld [vmem:[#allocation2] sm:$0xff]
    %v43 = vld [vmem:[#allocation5] sm:$0xf]
    %v44 = vld [vmem:[#allocation5 + $0x4] sm:$0xf]
    %v45 = vld [vmem:[#allocation5 + $0x8] sm:$0xf]
    %v46 = vld [vmem:[#allocation5 + $0xc] sm:$0xf]
    %v47 = vld [vmem:[#allocation5 + $0x10] sm:$0xf]
    %v48 = vld [vmem:[#allocation5 + $0x14] sm:$0xf]
    %v49 = vld [vmem:[#allocation5 + $0x18] sm:$0xf]
    %v50 = vld [vmem:[#allocation5 + $0x1c] sm:$0xf]
    %v51 = vld [vmem:[#allocation5 + $0x20] sm:$0xf]
    %v52 = vld [vmem:[#allocation5 + $0x24] sm:$0xf]
    %v53 = vld [vmem:[#allocation5 + $0x28] sm:$0xf]
    %v54 = vld [vmem:[#allocation5 + $0x2c] sm:$0xf]
    %v55 = vld [vmem:[#allocation5 + $0x30] sm:$0xf]
    %v56 = vld [vmem:[#allocation5 + $0x34] sm:$0xf]
    %v57 = vld [vmem:[#allocation5 + $0x38] sm:$0xf]
    %v58 = vld [vmem:[#allocation5 + $0x3c] sm:$0xf]
    %v59 = vld [vmem:[%s2] sm:$0x1]
    %v60 = vpack.c.bf16 %v42, %v42
    %v61 = vlaneseq
    %v62 = vshrl.u32 %v61, 7
    %v63 = vsub.s32 0, %v62
    %v64 = vrot.slane %v59, %v63
    %v81 = vunpack.c.l.b16 %v43
    %v82 = vunpack.c.l.b16 %v44
    %v83 = vunpack.c.l.b16 %v45
    %v84 = vunpack.c.l.b16 %v46
    %v85 = vunpack.c.l.b16 %v47
    %v86 = vunpack.c.l.b16 %v48
    %v87 = vunpack.c.l.b16 %v49
    %v88 = vunpack.c.l.b16 %v50
    %v89 = vunpack.c.l.b16 %v51
    %v90 = vunpack.c.l.b16 %v52
    %v91 = vunpack.c.l.b16 %v53
    %v92 = vunpack.c.l.b16 %v54
    %v93 = vunpack.c.l.b16 %v55
    %v94 = vunpack.c.l.b16 %v56
    %v95 = vunpack.c.l.b16 %v57
    %v96 = vunpack.c.l.b16 %v58
    %v97 = vpack.c.b16 %v82, %v81
    %v98 = vpack.c.b16 %v84, %v83
    %v99 = vpack.c.b16 %v86, %v85
    %v100 = vpack.c.b16 %v88, %v87
    %v101 = vpack.c.b16 %v90, %v89
    %v102 = vpack.c.b16 %v92, %v91
    %v103 = vpack.c.b16 %v94, %v93
    %v104 = vpack.c.b16 %v96, %v95
    %113 = vmatprep.subr.bf16.mxu0 0
    %114 = vmatpush1.bf16.msra.mxu0 %v97
    %115 = vmatprep.subr.bf16.mxu0 0
    %116 = vmatpush1.bf16.msra.mxu0 %v98
    %117 = vmatprep.subr.bf16.mxu0 0
    %118 = vmatpush1.bf16.msra.mxu0 %v99
    %119 = vmatprep.subr.bf16.mxu0 0
    %120 = vmatpush1.bf16.msra.mxu0 %v100
    %121 = vmatprep.subr.bf16.mxu0 0
    %122 = vmatpush1.bf16.msra.mxu0 %v101
    %123 = vmatprep.subr.bf16.mxu0 0
    %124 = vmatpush1.bf16.msra.mxu0 %v102
    %125 = vmatprep.subr.bf16.mxu0 0
    %126 = vmatpush1.bf16.msra.mxu0 %v103
    %127 = vmatprep.subr.bf16.mxu0 0
    %128 = vmatpush1.bf16.msra.mxu0 %v104
    %129 = vmatprep.subr.bf16.mxu0 0
    %130 = vmatpush1.bf16.msra.mxu0 0
    %131 = vmatprep.subr.bf16.mxu0 0
    %132 = vmatpush1.bf16.msra.mxu0 0
    %133 = vmatprep.subr.bf16.mxu0 0
    %134 = vmatpush1.bf16.msra.mxu0 0
    %135 = vmatprep.subr.bf16.mxu0 0
    %136 = vmatpush1.bf16.msra.mxu0 0
    %137 = vmatprep.subr.bf16.mxu0 0
    %138 = vmatpush1.bf16.msra.mxu0 0
    %139 = vmatprep.subr.bf16.mxu0 0
    %140 = vmatpush1.bf16.msra.mxu0 0
    %141 = vmatprep.subr.bf16.mxu0 0
    %142 = vmatpush1.bf16.msra.mxu0 0
    %143 = vmatprep.subr.bf16.mxu0 0
    %144 = vmatpush1.bf16.msra.mxu0 0
    %145 = vmatprep.mubr.bf16.mxu0 0
    %146 = vmatmul.mubr.bf16.gmra.mrb[0].mxu0 %v60
    %v147 = vpop.f32.mrb[0].mxu0
    %v148 = vadd.f32 %v64, %v147
    %v149 = vpop.f32.mrb[0].mxu0
    %v150 = vpop.f32.mrb[0].mxu0
    %v151 = vpop.f32.mrb[0].mxu0
    %152 = vdwg.mxu0
    %v153 = vtanh.pop %v148
    %v154 = vmul.f32 %v153, 0.7
    %v155 = vmul.f32 %v42, 0.3
    %v156 = vadd.f32 %v154, %v155
    %s157 = scalar_lea.vmem [#allocation5], 64
    %v158 = vld [vmem:[%s157] sm:$0xf]
    %v159 = vld [vmem:[%s157 + $0x4] sm:$0xf]
    %v160 = vld [vmem:[%s157 + $0x8] sm:$0xf]
    %v161 = vld [vmem:[%s157 + $0xc] sm:$0xf]
    %v162 = vld [vmem:[%s157 + $0x10] sm:$0xf]
    %v163 = vld [vmem:[%s157 + $0x14] sm:$0xf]
    %v164 = vld [vmem:[%s157 + $0x18] sm:$0xf]
    %v165 = vld [vmem:[%s157 + $0x1c] sm:$0xf]
    %v166 = vld [vmem:[%s157 + $0x20] sm:$0xf]
    %v167 = vld [vmem:[%s157 + $0x24] sm:$0xf]
    %v168 = vld [vmem:[%s157 + $0x28] sm:$0xf]
    %v169 = vld [vmem:[%s157 + $0x2c] sm:$0xf]
    %v170 = vld [vmem:[%s157 + $0x30] sm:$0xf]
    %v171 = vld [vmem:[%s157 + $0x34] sm:$0xf]
    %v172 = vld [vmem:[%s157 + $0x38] sm:$0xf]
    %v173 = vld [vmem:[%s157 + $0x3c] sm:$0xf]
    %v174 = vld [vmem:[%s2 + $0x1] sm:$0x1]
    %v175 = vpack.c.bf16 %v156, %v156
    %v176 = vlaneseq
    %v177 = vshrl.u32 %v176, 7
    %v178 = vsub.s32 0, %v177
    %v179 = vrot.slane %v174, %v178
    %v196 = vunpack.c.l.b16 %v158
    %v197 = vunpack.c.l.b16 %v159
    %v198 = vunpack.c.l.b16 %v160
    %v199 = vunpack.c.l.b16 %v161
    %v200 = vunpack.c.l.b16 %v162
    %v201 = vunpack.c.l.b16 %v163
    %v202 = vunpack.c.l.b16 %v164
    %v203 = vunpack.c.l.b16 %v165
    %v204 = vunpack.c.l.b16 %v166
    %v205 = vunpack.c.l.b16 %v167
    %v206 = vunpack.c.l.b16 %v168
    %v207 = vunpack.c.l.b16 %v169
    %v208 = vunpack.c.l.b16 %v170
    %v209 = vunpack.c.l.b16 %v171
    %v210 = vunpack.c.l.b16 %v172
    %v211 = vunpack.c.l.b16 %v173
    %v212 = vpack.c.b16 %v197, %v196
    %v213 = vpack.c.b16 %v199, %v198
    %v214 = vpack.c.b16 %v201, %v200
    %v215 = vpack.c.b16 %v203, %v202
    %v216 = vpack.c.b16 %v205, %v204
    %v217 = vpack.c.b16 %v207, %v206
    %v218 = vpack.c.b16 %v209, %v208
    %v219 = vpack.c.b16 %v211, %v210
    %228 = vmatprep.subr.bf16.mxu0 0
    %229 = vmatpush1.bf16.msra.mxu0 %v212
    %230 = vmatprep.subr.bf16.mxu0 0
    %231 = vmatpush1.bf16.msra.mxu0 %v213
    %232 = vmatprep.subr.bf16.mxu0 0
    %233 = vmatpush1.bf16.msra.mxu0 %v214
    %234 = vmatprep.subr.bf16.mxu0 0
    %235 = vmatpush1.bf16.msra.mxu0 %v215
    %236 = vmatprep.subr.bf16.mxu0 0
    %237 = vmatpush1.bf16.msra.mxu0 %v216
    %238 = vmatprep.subr.bf16.mxu0 0
    %239 = vmatpush1.bf16.msra.mxu0 %v217
    %240 = vmatprep.subr.bf16.mxu0 0
    %241 = vmatpush1.bf16.msra.mxu0 %v218
    %242 = vmatprep.subr.bf16.mxu0 0
    %243 = vmatpush1.bf16.msra.mxu0 %v219
    %244 = vmatprep.subr.bf16.mxu0 0
    %245 = vmatpush1.bf16.msra.mxu0 0
    %246 = vmatprep.subr.bf16.mxu0 0
    %247 = vmatpush1.bf16.msra.mxu0 0
    %248 = vmatprep.subr.bf16.mxu0 0
    %249 = vmatpush1.bf16.msra.mxu0 0
    %250 = vmatprep.subr.bf16.mxu0 0
    %251 = vmatpush1.bf16.msra.mxu0 0
    %252 = vmatprep.subr.bf16.mxu0 0
    %253 = vmatpush1.bf16.msra.mxu0 0
    %254 = vmatprep.subr.bf16.mxu0 0
    %255 = vmatpush1.bf16.msra.mxu0 0
    %256 = vmatprep.subr.bf16.mxu0 0
    %257 = vmatpush1.bf16.msra.mxu0 0
    %258 = vmatprep.subr.bf16.mxu0 0
    %259 = vmatpush1.bf16.msra.mxu0 0
    %260 = vmatprep.mubr.bf16.mxu0 0
    %261 = vmatmul.mubr.bf16.gmra.mrb[0].mxu0 %v175
    %v262 = vpop.f32.mrb[0].mxu0
    %v263 = vadd.f32 %v179, %v262
    %v264 = vpop.f32.mrb[0].mxu0
    %v265 = vpop.f32.mrb[0].mxu0
    %v266 = vpop.f32.mrb[0].mxu0
    %267 = vdwg.mxu0
    %v268 = vtanh.pop %v263
    %v269 = vmul.f32 %v268, 0.7
    %v270 = vmul.f32 %v156, 0.3
    %v271 = vadd.f32 %v269, %v270
    %s272 = scalar_lea.vmem [#allocation5], 128
    %v273 = vld [vmem:[%s272] sm:$0xf]
    %v274 = vld [vmem:[%s272 + $0x4] sm:$0xf]
    %v275 = vld [vmem:[%s272 + $0x8] sm:$0xf]
    %v276 = vld [vmem:[%s272 + $0xc] sm:$0xf]
    %v277 = vld [vmem:[%s272 + $0x10] sm:$0xf]
    %v278 = vld [vmem:[%s272 + $0x14] sm:$0xf]
    %v279 = vld [vmem:[%s272 + $0x18] sm:$0xf]
    %v280 = vld [vmem:[%s272 + $0x1c] sm:$0xf]
    %v281 = vld [vmem:[%s272 + $0x20] sm:$0xf]
    %v282 = vld [vmem:[%s272 + $0x24] sm:$0xf]
    %v283 = vld [vmem:[%s272 + $0x28] sm:$0xf]
    %v284 = vld [vmem:[%s272 + $0x2c] sm:$0xf]
    %v285 = vld [vmem:[%s272 + $0x30] sm:$0xf]
    %v286 = vld [vmem:[%s272 + $0x34] sm:$0xf]
    %v287 = vld [vmem:[%s272 + $0x38] sm:$0xf]
    %v288 = vld [vmem:[%s272 + $0x3c] sm:$0xf]
    %v289 = vld [vmem:[%s2 + $0x2] sm:$0x1]
    %v290 = vpack.c.bf16 %v271, %v271
    %v291 = vlaneseq
    %v292 = vshrl.u32 %v291, 7
    %v293 = vsub.s32 0, %v292
    %v294 = vrot.slane %v289, %v293
    %v311 = vunpack.c.l.b16 %v273
    %v312 = vunpack.c.l.b16 %v274
    %v313 = vunpack.c.l.b16 %v275
    %v314 = vunpack.c.l.b16 %v276
    %v315 = vunpack.c.l.b16 %v277
    %v316 = vunpack.c.l.b16 %v278
    %v317 = vunpack.c.l.b16 %v279
    %v318 = vunpack.c.l.b16 %v280
    %v319 = vunpack.c.l.b16 %v281
    %v320 = vunpack.c.l.b16 %v282
    %v321 = vunpack.c.l.b16 %v283
    %v322 = vunpack.c.l.b16 %v284
    %v323 = vunpack.c.l.b16 %v285
    %v324 = vunpack.c.l.b16 %v286
    %v325 = vunpack.c.l.b16 %v287
    %v326 = vunpack.c.l.b16 %v288
    %v327 = vpack.c.b16 %v312, %v311
    %v328 = vpack.c.b16 %v314, %v313
    %v329 = vpack.c.b16 %v316, %v315
    %v330 = vpack.c.b16 %v318, %v317
    %v331 = vpack.c.b16 %v320, %v319
    %v332 = vpack.c.b16 %v322, %v321
    %v333 = vpack.c.b16 %v324, %v323
    %v334 = vpack.c.b16 %v326, %v325
    %343 = vmatprep.subr.bf16.mxu0 0
    %344 = vmatpush1.bf16.msra.mxu0 %v327
    %345 = vmatprep.subr.bf16.mxu0 0
    %346 = vmatpush1.bf16.msra.mxu0 %v328
    %347 = vmatprep.subr.bf16.mxu0 0
    %348 = vmatpush1.bf16.msra.mxu0 %v329
    %349 = vmatprep.subr.bf16.mxu0 0
    %350 = vmatpush1.bf16.msra.mxu0 %v330
    %351 = vmatprep.subr.bf16.mxu0 0
    %352 = vmatpush1.bf16.msra.mxu0 %v331
    %353 = vmatprep.subr.bf16.mxu0 0
    %354 = vmatpush1.bf16.msra.mxu0 %v332
    %355 = vmatprep.subr.bf16.mxu0 0
    %356 = vmatpush1.bf16.msra.mxu0 %v333
    %357 = vmatprep.subr.bf16.mxu0 0
    %358 = vmatpush1.bf16.msra.mxu0 %v334
    %359 = vmatprep.subr.bf16.mxu0 0
    %360 = vmatpush1.bf16.msra.mxu0 0
    %361 = vmatprep.subr.bf16.mxu0 0
    %362 = vmatpush1.bf16.msra.mxu0 0
    %363 = vmatprep.subr.bf16.mxu0 0
    %364 = vmatpush1.bf16.msra.mxu0 0
    %365 = vmatprep.subr.bf16.mxu0 0
    %366 = vmatpush1.bf16.msra.mxu0 0
    %367 = vmatprep.subr.bf16.mxu0 0
    %368 = vmatpush1.bf16.msra.mxu0 0
    %369 = vmatprep.subr.bf16.mxu0 0
    %370 = vmatpush1.bf16.msra.mxu0 0
    %371 = vmatprep.subr.bf16.mxu0 0
    %372 = vmatpush1.bf16.msra.mxu0 0
    %373 = vmatprep.subr.bf16.mxu0 0
    %374 = vmatpush1.bf16.msra.mxu0 0
    %375 = vmatprep.mubr.bf16.mxu0 0
    %376 = vmatmul.mubr.bf16.gmra.mrb[0].mxu0 %v290
    %v377 = vpop.f32.mrb[0].mxu0
    %v378 = vadd.f32 %v294, %v377
    %v379 = vpop.f32.mrb[0].mxu0
    %v380 = vpop.f32.mrb[0].mxu0
    %v381 = vpop.f32.mrb[0].mxu0
    %382 = vdwg.mxu0
    %v383 = vtanh.pop %v378
    %v384 = vmul.f32 %v383, 0.7
    %v385 = vmul.f32 %v271, 0.3
    %v386 = vadd.f32 %v384, %v385
    %387 = vst [vmem:[#allocation7] sm:$0xff] %v386
    // Predicated region
    $region22: #{tpu_custom_call.1} parent=1 // pred_check
      _
    $region23: #{tpu_custom_call.1} parent=1 // pred_check_branch
      %389 = sbr.rel (0) target = $region25
    $region24: #{tpu_custom_call.1} parent=1 // pred_region
      %s391 = ssub.s32 128, 128
      %392 = vsyncadd [#allocation4], %s391
      %s394 = sshll.u32 [#allocation7], 4
      %s395 = int_to_ptr.vmem [resolvable:$true] %s394
      %397 = dma.vmem_to_hbm [thread:$0]  %s395, 128, %s3, [#allocation4]
    $region25: #{tpu_custom_call.1} parent=1 // pred_fallthru
      _
    // Predicated region
    $region26: #{tpu_custom_call.1} parent=1 // pred_check
      _
    $region27: #{tpu_custom_call.1} parent=1 // pred_check_branch
      %399 = sbr.rel (0) target = $region29
    $region28: #{tpu_custom_call.1} parent=1 // pred_region
      %400 = dma.done [#allocation4], 128
    $region29: #{tpu_custom_call.1} parent=1 // pred_fallthru
      _
    %401 = vsyncpa [#allocation3], 1
    %402 = vsyncpa [#allocation6], 1
    %403 = vsyncpa [#allocation4], 1

</llo_original>
